<compile_context>
chip_gen: v6e
topology: v6e:2x2x1
jax: 0.10.0
libtpu: 0.0.40
codegen_flags: <defaults>
</compile_context>

<pallas_src>
import math
import functools

import jax
import jax.numpy as jnp
from jax.experimental import pallas as pl
from jax.experimental.pallas import tpu as pltpu


def _pe_add_kernel(x_ref, pe_ref, o_ref, *, batch):
    """Eval mode: x_ref (TS, B*D), pe_ref (TS, D)."""
    pe = jnp.tile(pe_ref[...], (1, batch))                 # (TS, B*D), hoisted once per tile
    o_ref[...] = (x_ref[...] + pe).astype(o_ref.dtype)


def _pe_dropout_hw_kernel(seed_ref, x_ref, pe_ref, o_ref, *, batch, threshold, scale):
    """Training mode on TPU: on-chip PRNG, per-tile seed."""
    pe = jnp.tile(pe_ref[...], (1, batch))                 # (TS, B*D)
    y = x_ref[...] + pe
    pltpu.prng_seed(seed_ref[0] + pl.program_id(0))        # distinct mask per tile
    bits = pltpu.bitcast(pltpu.prng_random_bits(y.shape), jnp.uint32)
    keep = bits >= jnp.uint32(threshold)                   # integer threshold, no f32 convert
    o_ref[...] = jnp.where(keep, y * jnp.float32(scale),
                           jnp.zeros_like(y)).astype(o_ref.dtype)


def _pe_dropout_bits_kernel(x_ref, pe_ref, bits_ref, o_ref, *, batch, threshold, scale):
    """Training mode fallback (non-TPU / interpret): bits streamed in as input."""
    pe = jnp.tile(pe_ref[...], (1, batch))
    y = x_ref[...] + pe
    keep = bits_ref[...] >= jnp.uint32(threshold)
    o_ref[...] = jnp.where(keep, y * jnp.float32(scale),
                           jnp.zeros_like(y)).astype(o_ref.dtype)


def _choose_s_tile(seq_len, row_bytes, target_bytes=1 << 20):
    """Rows per tile: ~1 MiB blocks, multiple of 8 (sublane) unless full S."""
    if seq_len <= 8:
        return seq_len
    ts = max(8, (target_bytes // max(row_bytes, 1)) // 8 * 8)
    return min(ts, seq_len)


def make_positional_encoding(d_model, dropout=0.1, max_len=5000):
    """Returns (pe_table, apply_fn). pe_table has shape (max_len, 1, d_model)."""
    position = jnp.arange(max_len, dtype=jnp.float32)[:, None]             # (L, 1)
    div_term = jnp.exp(
        jnp.arange(0, d_model, 2, dtype=jnp.float32)
        * (-(math.log(10000.0) / d_model))
    )                                                                       # (D/2,)
    pe = jnp.zeros((max_len, 1, d_model), dtype=jnp.float32)
    pe = pe.at[:, 0, 0::2].set(jnp.sin(position * div_term))
    pe = pe.at[:, 0, 1::2].set(jnp.cos(position * div_term))

    p = float(dropout)
    on_tpu = jax.default_backend() == "tpu"

    def apply(x, *, seed=0, training=False):
        # x: (S, B, D)
        S, B, D = x.shape
        assert D == d_model
        BD = B * D

        x2 = x.reshape(S, BD)                       # lane-dense layout, free reshape
        pe_s = pe[:S, 0, :]                         # (S, D), small second operand

        ts = _choose_s_tile(S, BD * x.dtype.itemsize)
        grid = (pl.cdiv(S, ts),)
        x_spec = pl.BlockSpec((ts, BD), lambda i: (i, 0))
        pe_spec = pl.BlockSpec((ts, D), lambda i: (i, 0))
        bits_spec = pl.BlockSpec((ts, BD), lambda i: (i, 0))
        out_spec = pl.BlockSpec((ts, BD), lambda i: (i, 0))
        out_shape = jax.ShapeDtypeStruct((S, BD), x.dtype)
        cparams = (pltpu.CompilerParams(dimension_semantics=("parallel",))
                   if on_tpu else None)

        if not (training and p > 0.0):
            out = pl.pallas_call(
                functools.partial(_pe_add_kernel, batch=B),
                out_shape=out_shape,
                grid=grid,
                in_specs=[x_spec, pe_spec],
                out_specs=out_spec,
                compiler_params=cparams,
            )(x2, pe_s)
        else:
            threshold = min(int(round(p * float(1 << 32))), (1 << 32) - 1)
            scale = 1.0 / (1.0 - p)
            if on_tpu:
                seed_arr = jnp.asarray([seed], dtype=jnp.int32)
                out = pl.pallas_call(
                    functools.partial(_pe_dropout_hw_kernel, batch=B,
                                      threshold=threshold, scale=scale),
                    out_shape=out_shape,
                    grid=grid,
                    in_specs=[pl.BlockSpec(memory_space=pltpu.SMEM),  # seed scalar
                              x_spec, pe_spec],
                    out_specs=out_spec,
                    compiler_params=cparams,
                )(seed_arr, x2, pe_s)
            else:
                # Portable path: host-generated bits, same tiling as x.
                bits = jax.random.bits(jax.random.PRNGKey(seed), (S, BD),
                                       dtype=jnp.uint32)
                out = pl.pallas_call(
                    functools.partial(_pe_dropout_bits_kernel, batch=B,
                                      threshold=threshold, scale=scale),
                    out_shape=out_shape,
                    grid=grid,
                    in_specs=[x_spec, pe_spec, bits_spec],
                    out_specs=out_spec,
                    compiler_params=cparams,
                )(x2, pe_s, bits)

        return out.reshape(S, B, D)

    return pe, apply


if __name__ == "__main__":
    d_model = 32
    seq_len = 8
    batch = 2
    dropout_p = 0.1

    key = jax.random.PRNGKey(0)
    x = jax.random.normal(key, (seq_len, batch, d_model), dtype=jnp.float32)

    pe_table, pos_enc = make_positional_encoding(d_model, dropout=dropout_p,
                                                 max_len=5000)

    # Eval mode (dropout = identity): deterministic, check against reference.
    y_eval = jax.block_until_ready(pos_enc(x, training=False))
    ref = x + pe_table[:seq_len]                 # (S,1,D) broadcasts over batch
    assert y_eval.shape == (seq_len, batch, d_model)
    assert jnp.allclose(y_eval, ref, atol=1e-6), "eval-mode mismatch"

    # Training mode (stochastic inverted dropout, deterministic given seed).
    y_train = jax.block_until_ready(pos_enc(x, seed=123, training=True))
    assert y_train.shape == (seq_len, batch, d_model)
    ref_scaled = ref / (1.0 - dropout_p)
    kept = y_train != 0.0
    # Every kept element must equal (x + pe) / (1 - p).
    assert jnp.allclose(jnp.where(kept, y_train, ref_scaled), ref_scaled,
                        rtol=1e-5, atol=1e-5), "training-mode kept values mismatch"
    assert jnp.mean(kept.astype(jnp.float32)) > 0.5, "dropout kept fraction too low"

    print("KERNEL_OK")
</pallas_src>

<mosaic_0001>
module attributes {stable_mosaic.version = 11 : i64} {
  func.func @_pe_add_kernel(%arg0: i32, %arg1: memref<8x64xf32, #tpu.memory_space<vmem>>, %arg2: memref<8x32xf32, #tpu.memory_space<vmem>>, %arg3: memref<8x64xf32, #tpu.memory_space<vmem>>) attributes {dimension_semantics = [#tpu.dimension_semantics<arbitrary>], iteration_bounds = array<i64: 1>, scalar_prefetch = 0 : i64, scratch_operands = 0 : i64, tpu.core_type = #tpu.core_type<tc>, window_params = [{transform_indices = @transform_0, window_bounds = array<i64: 8, 64>}, {transform_indices = @transform_1, window_bounds = array<i64: 8, 32>}, {transform_indices = @transform_2, window_bounds = array<i64: 8, 64>}]} {
    %c0 = arith.constant 0 : index
    %c0_0 = arith.constant 0 : index
    %0 = vector.load %arg2[%c0, %c0_0] : memref<8x32xf32, #tpu.memory_space<vmem>>, vector<8x32xf32>
    %1 = tpu.concatenate %0, %0 in 1 : vector<8x32xf32>, vector<8x32xf32> -> vector<8x64xf32>
    %c0_1 = arith.constant 0 : index
    %c0_2 = arith.constant 0 : index
    %2 = vector.load %arg1[%c0_1, %c0_2] : memref<8x64xf32, #tpu.memory_space<vmem>>, vector<8x64xf32>
    %3 = arith.addf %2, %1 : vector<8x64xf32>
    %c0_3 = arith.constant 0 : index
    %c0_4 = arith.constant 0 : index
    %4 = vector.load %arg3[%c0_3, %c0_4] : memref<8x64xf32, #tpu.memory_space<vmem>>, vector<8x64xf32>
    tpu.vector_store %arg3[%c0_3, %c0_4], %3 {strides = array<i32>} : memref<8x64xf32, #tpu.memory_space<vmem>>, vector<8x64xf32>,
    return
  }
  func.func @transform_0(%arg0: i32) -> (i32, i32) {
    %c0_i32 = arith.constant 0 : i32
    %c0_i32_0 = arith.constant 0 : i32
    return %arg0, %c0_i32 : i32, i32
  }
  func.func @transform_1(%arg0: i32) -> (i32, i32) {
    %c0_i32 = arith.constant 0 : i32
    %c0_i32_0 = arith.constant 0 : i32
    return %arg0, %c0_i32 : i32, i32
  }
  func.func @transform_2(%arg0: i32) -> (i32, i32) {
    %c0_i32 = arith.constant 0 : i32
    %c0_i32_0 = arith.constant 0 : i32
    return %arg0, %c0_i32 : i32, i32
  }
}

</mosaic_0001>

<llo_original>
// kernel: tpu_custom_call.1
$region0: #{tpu_custom_call.1}
  #allocation0 [shape = 'u32[]', space=smem, size = 0x4, offset = 0x4, fixed_abs, tag = 'smem constant byte address 0x4 - core index']
  #allocation1 [shape = 'u32[144,128]{1,0:T(1,128)}', space=vmem, size = 0x12000, scoped, tag = 'internal scratch']
  %s0 = inlined_call_operand.hbm [shape: f32[8,64], index: 0, kind: input, shape index: {}]
  %s1 = inlined_call_operand.hbm [shape: f32[8,32], index: 1, kind: input, shape index: {}]
  %s2 = inlined_call_operand.hbm [shape: f32[8,64], index: 2, kind: output, shape index: {}]
  %s3 = sld [smem:[#allocation0]]
  $region26: #{tpu_custom_call.1} parent=0
    _
  %s5 = ssub.s32 1, %s3
  %s6 = scalar_select 0, %s5, %s3
  $region1: #{tpu_custom_call.1} parent=0
    #allocation2 [shape = 'u8[4096]{0}', space=vmem, size = 0x1000, scoped, tag = 'input window, operand 0, single buffered']
    #allocation3 [shape = 's32[1]{0}', space=sflag, size = 0x4, scoped, tag = 'scoped memory for tpu_custom_call.1']
    #allocation4 [shape = 's32[1]{0}', space=sflag, size = 0x4, scoped, tag = 'scoped memory for tpu_custom_call.1']
    #allocation5 [shape = 'u8[4096]{0}', space=vmem, size = 0x1000, scoped, tag = 'input window, operand 1, single buffered']
    #allocation6 [shape = 's32[1]{0}', space=sflag, size = 0x4, scoped, tag = 'scoped memory for tpu_custom_call.1']
    #allocation7 [shape = 'u8[4096]{0}', space=vmem, size = 0x1000, scoped, tag = 'output window, operand 0, single buffered']
    %7 = vsyncpa [#allocation3], 0
    %8 = vsyncpa [#allocation6], 0
    %9 = vsyncpa [#allocation4], 0
    // Predicated region
    $region2: #{tpu_custom_call.1} parent=1 // pred_check
      _
    $region3: #{tpu_custom_call.1} parent=1 // pred_check_branch
      %11 = sbr.rel (0) target = $region5
    $region4: #{tpu_custom_call.1} parent=1 // pred_region
      %s13 = ssub.s32 128, 128
      %14 = vsyncadd [#allocation3], %s13
      %s16 = sshll.u32 [#allocation2], 4
      %s17 = int_to_ptr.vmem [resolvable:$true] %s16
      %19 = dma.hbm_to_vmem [thread:$0]  %s0, 128, %s17, [#allocation3]
    $region5: #{tpu_custom_call.1} parent=1 // pred_fallthru
      _
    // Predicated region
    $region6: #{tpu_custom_call.1} parent=1 // pred_check
      _
    $region7: #{tpu_custom_call.1} parent=1 // pred_check_branch
      %21 = sbr.rel (0) target = $region9
    $region8: #{tpu_custom_call.1} parent=1 // pred_region
      %s23 = ssub.s32 128, 128
      %24 = vsyncadd [#allocation6], %s23
      %s26 = sshll.u32 [#allocation5], 4
      %s27 = int_to_ptr.vmem [resolvable:$true] %s26
      %29 = dma.hbm_to_vmem [thread:$0]  %s1, 128, %s27, [#allocation6]
    $region9: #{tpu_custom_call.1} parent=1 // pred_fallthru
      _
    // Predicated region
    $region10: #{tpu_custom_call.1} parent=1 // pred_check
      _
    $region11: #{tpu_custom_call.1} parent=1 // pred_check_branch
      %31 = sbr.rel (0) target = $region13
    $region12: #{tpu_custom_call.1} parent=1 // pred_region
      %32 = dma.done [#allocation3], 128
    $region13: #{tpu_custom_call.1} parent=1 // pred_fallthru
      _
    // Predicated region
    $region14: #{tpu_custom_call.1} parent=1 // pred_check
      _
    $region15: #{tpu_custom_call.1} parent=1 // pred_check_branch
      %34 = sbr.rel (0) target = $region17
    $region16: #{tpu_custom_call.1} parent=1 // pred_region
      %35 = dma.done [#allocation6], 128
    $region17: #{tpu_custom_call.1} parent=1 // pred_fallthru
      _
    %v36 = vld [vmem:[#allocation5] sm:$0xff]
    %38 = vrot.lane.b32.xlu0 %v36, 32
    %v39 = vpop.permute.xlu0 %38
    %vm41 = vcmask 261120
    %v42 = vsel %vm41, %v36, %v39
    %v43 = vld [vmem:[#allocation2] sm:$0xff]
    %v44 = vadd.f32 %v43, %v42
    %vm45 = vcmask 523264
    %46 = vst.msk [vmem:[#allocation7] sm:$0xff] %vm45, %v44
    // Predicated region
    $region18: #{tpu_custom_call.1} parent=1 // pred_check
      _
    $region19: #{tpu_custom_call.1} parent=1 // pred_check_branch
      %48 = sbr.rel (0) target = $region21
    $region20: #{tpu_custom_call.1} parent=1 // pred_region
      %s50 = ssub.s32 128, 128
      %51 = vsyncadd [#allocation4], %s50
      %s53 = sshll.u32 [#allocation7], 4
      %s54 = int_to_ptr.vmem [resolvable:$true] %s53
      %56 = dma.vmem_to_hbm [thread:$0]  %s54, 128, %s2, [#allocation4]
    $region21: #{tpu_custom_call.1} parent=1 // pred_fallthru
      _
    // Predicated region
    $region22: #{tpu_custom_call.1} parent=1 // pred_check
      _
    $region23: #{tpu_custom_call.1} parent=1 // pred_check_branch
      %58 = sbr.rel (0) target = $region25
    $region24: #{tpu_custom_call.1} parent=1 // pred_region
      %59 = dma.done [#allocation4], 128
    $region25: #{tpu_custom_call.1} parent=1 // pred_fallthru
      _
    %60 = vsyncpa [#allocation3], 1
    %61 = vsyncpa [#allocation6], 1
    %62 = vsyncpa [#allocation4], 1

</llo_original>
